<compile_context>
chip_gen: v7x
topology: tpu7x:2x2x1
jax: 0.10.0
libtpu: 0.0.40
codegen_flags: <defaults>
</compile_context>

<pallas_src>
import jax
import jax.numpy as jnp
from jax import lax
from jax.experimental import pallas as pl
from jax.experimental.pallas import tpu as pltpu

_EPS = 1e-12                      # F.normalize default eps
_MIN_PALLAS_BYTES = 1 << 20       # below this, plain JAX is faster (launch cost)


# --------------------------------------------------------------------------
# Kernel: per-row (feature-axis) reductions for one batch tile.
# --------------------------------------------------------------------------
def _row_stats_kernel(z1_ref, z2_ref, s1_ref, s2_ref, out_ref):
    """out_ref is a lane-dense (3, TM) block:
         row 0: sim[i]  = <z1[i], z2[i]> / (max(||z1[i]||, eps) * max(||z2[i]||, eps))
         row 1: mean(scale1[i])
         row 2: mean(scale2[i])
    """
    z1 = z1_ref[...].astype(jnp.float32)                      # (TM, D)
    z2 = z2_ref[...].astype(jnp.float32)                      # (TM, D)

    dot = jnp.sum(z1 * z2, axis=-1, keepdims=True)            # (TM, 1)
    n1s = jnp.sum(z1 * z1, axis=-1, keepdims=True)
    n2s = jnp.sum(z2 * z2, axis=-1, keepdims=True)

    # max(||z||, eps) == sqrt(max(||z||^2, eps^2)); rsqrt rides the EUP slot.
    eps2 = jnp.float32(_EPS * _EPS)
    sim = dot * lax.rsqrt(jnp.maximum(n1s, eps2)) * lax.rsqrt(jnp.maximum(n2s, eps2))

    m1 = jnp.mean(s1_ref[...].astype(jnp.float32), axis=-1, keepdims=True)
    m2 = jnp.mean(s2_ref[...].astype(jnp.float32), axis=-1, keepdims=True)

    stats = jnp.concatenate([sim, m1, m2], axis=-1)           # (TM, 3)
    out_ref[...] = stats.T                                    # (3, TM) lane-dense


# --------------------------------------------------------------------------
# Tile sizing / VMEM accounting.
# --------------------------------------------------------------------------
def _vmem_capacity_bytes():
    """Per-TensorCore VMEM capacity; conservative (v7x) fallback."""
    try:
        info = pltpu.get_tpu_info()
        cap = getattr(info, "vmem_capacity_bytes", None)
        if cap:
            return int(cap)
    except Exception:
        pass
    return 64 * 1024 * 1024


def _pick_row_tile(n, d_pad, itemsize_sum, vmem_cap):
    """Row tile chosen by bytes-per-step:
       double-buffered tiled-input footprint <= ~30% of per-core VMEM
       (v7x ~19 MiB, v5e/v6e ~38 MiB), leaving headroom for f32 temps.
       TM is a multiple of 128 (lane-dense output block) and the grid keeps
       >= 2 steps when N > 128 so both v7x TensorCores get work."""
    if n <= 128:
        return n
    budget = int(0.30 * vmem_cap)
    tm = budget // (2 * d_pad * max(itemsize_sum, 1))
    tm = (tm // 128) * 128
    tm = max(128, min(tm, 8192))
    half = ((-(-n // 2)) + 127) // 128 * 128     # ceil(n/2) rounded up to 128
    tm = min(tm, max(128, half))
    return tm


# --------------------------------------------------------------------------
# Pallas path: per-row statistics.
# --------------------------------------------------------------------------
def _pallas_row_stats(loc1, loc2, scale1, scale2):
    n, d = loc1.shape
    d_pad = ((d + 127) // 128) * 128
    itemsize_sum = sum(jnp.dtype(a.dtype).itemsize
                       for a in (loc1, loc2, scale1, scale2))

    cap = _vmem_capacity_bytes()
    tm = _pick_row_tile(n, d_pad, itemsize_sum, cap)
    grid_m = pl.cdiv(n, tm)
    n_pad = grid_m * tm                       # output width (multiple of TM)

    tile_in_bytes = tm * d_pad * itemsize_sum
    vmem_limit = int(min(int(0.9 * cap),
                         max(6 * tile_in_bytes + (8 << 20), 32 << 20)))

    in_specs = [pl.BlockSpec((tm, d), lambda i: (i, 0)) for _ in range(4)]
    out_spec = pl.BlockSpec((3, tm), lambda i: (0, i))

    total_in_bytes = sum(int(a.size) * jnp.dtype(a.dtype).itemsize
                         for a in (loc1, loc2, scale1, scale2))
    cost = pl.CostEstimate(
        flops=int(8 * n * d),                 # 3 row dots + 2 row means
        transcendentals=int(2 * n),           # 2 rsqrt per row
        bytes_accessed=int(total_in_bytes + 3 * n_pad * 4),
    )

    stats = pl.pallas_call(
        _row_stats_kernel,
        grid=(grid_m,),
        in_specs=in_specs,
        out_specs=out_spec,
        out_shape=jax.ShapeDtypeStruct((3, n_pad), jnp.float32),
        compiler_params=pltpu.CompilerParams(
            dimension_semantics=("parallel",),
            vmem_limit_bytes=vmem_limit,
        ),
        cost_estimate=cost,
    )(loc1, loc2, scale1, scale2)

    stats = stats[:, :n]                      # drop padded (garbage) columns
    return stats[0], stats[1], stats[2]


# --------------------------------------------------------------------------
# Plain-JAX fallback for tiny problems (launch/pipeline overhead dominates).
# --------------------------------------------------------------------------
def _plain_row_stats(loc1, loc2, scale1, scale2):
    z1 = loc1.astype(jnp.float32)
    z2 = loc2.astype(jnp.float32)
    dot = jnp.sum(z1 * z2, axis=-1)
    n1s = jnp.sum(z1 * z1, axis=-1)
    n2s = jnp.sum(z2 * z2, axis=-1)
    eps2 = jnp.float32(_EPS * _EPS)
    sim = dot * lax.rsqrt(jnp.maximum(n1s, eps2)) * lax.rsqrt(jnp.maximum(n2s, eps2))
    m1 = jnp.mean(scale1.astype(jnp.float32), axis=-1)
    m2 = jnp.mean(scale2.astype(jnp.float32), axis=-1)
    return sim, m1, m2


# --------------------------------------------------------------------------
# Public entry point (== UncertaintyLoss.forward).
# --------------------------------------------------------------------------
def uncertainty_loss(loc1, scale1, loc2, scale2, lambda_unc=0.0, *,
                     use_pallas=None):
    """loc1/loc2/scale1/scale2: [N, D] arrays (the .loc/.scale of the two
    distributions). Returns a scalar float32 loss.
    `.detach()` in the PyTorch module is a no-op here (forward only)."""
    n, d = loc1.shape
    assert loc2.shape == (n, d)
    assert scale1.shape == (n, d) and scale2.shape == (n, d)

    if use_pallas is None:
        total_in = sum(int(a.size) * jnp.dtype(a.dtype).itemsize
                       for a in (loc1, loc2, scale1, scale2))
        use_pallas = total_in >= _MIN_PALLAS_BYTES

    if use_pallas:
        sim, m1, m2 = _pallas_row_stats(loc1, loc2, scale1, scale2)
    else:
        sim, m1, m2 = _plain_row_stats(loc1, loc2, scale1, scale2)

    # Reproduce torch.cat([scale1, scale2], dim=0).view(N, -1).mean(dim=1)
    # on the already-reduced per-row means (both halves share feature width D):
    #   unc[i] = 0.5 * (rowmean(stacked[2i]) + rowmean(stacked[2i+1]))
    m_stacked = jnp.concatenate([m1, m2], axis=0)               # (2N,)
    unc = 0.5 * (m_stacked[0::2] + m_stacked[1::2])             # (N,)

    # NOTE: as in the PyTorch module, log(unc) requires every per-row
    # uncertainty mean to be strictly positive.
    loss = jnp.mean((jnp.float32(1.0) - sim) * unc - jnp.log(unc))
    return loss * jnp.float32(lambda_unc)


# --------------------------------------------------------------------------
# Pure-JAX reference mirroring the PyTorch forward exactly.
# --------------------------------------------------------------------------
def _reference(loc1, scale1, loc2, scale2, lambda_unc):
    n_batch = loc1.shape[0]
    eps = 1e-12
    z1 = loc1 / jnp.maximum(jnp.linalg.norm(loc1, axis=-1, keepdims=True), eps)
    z2 = loc2 / jnp.maximum(jnp.linalg.norm(loc2, axis=-1, keepdims=True), eps)
    sim = jnp.sum(z1 * z2, axis=-1)          # == diag(z1 @ z2.T)
    unc = jnp.concatenate([scale1, scale2], axis=0).reshape(n_batch, -1)
    unc = jnp.mean(unc, axis=1)
    loss = jnp.mean((1.0 - sim) * unc - jnp.log(unc))
    return loss * lambda_unc


if __name__ == "__main__":
    key = jax.random.PRNGKey(0)
    k1, k2, k3, k4 = jax.random.split(key, 4)
    lambda_unc = 0.5

    # Small but non-degenerate shapes: N=256 gives a 2-step grid
    # (both v7x TensorCores active), D=128 is one full lane group.
    N, D = 256, 128
    loc1 = jax.random.normal(k1, (N, D), dtype=jnp.float32)
    loc2 = jax.random.normal(k2, (N, D), dtype=jnp.float32)
    # scales must be positive (log(unc) in the loss)
    scale1 = jax.nn.softplus(jax.random.normal(k3, (N, D), dtype=jnp.float32)) + 0.1
    scale2 = jax.nn.softplus(jax.random.normal(k4, (N, D), dtype=jnp.float32)) + 0.1

    # Pallas path (forced, so the kernel definitely runs at this small size).
    out = uncertainty_loss(loc1, scale1, loc2, scale2,
                           lambda_unc=lambda_unc, use_pallas=True)
    out = jax.block_until_ready(out)
    ref = _reference(loc1, scale1, loc2, scale2, lambda_unc)
    assert jnp.allclose(out, ref, rtol=1e-5, atol=1e-5), (out, ref)

    # Tiny-problem auto path (plain-JAX fallback) sanity check.
    Ns, Ds = 8, 32
    l1s, l2s = loc1[:Ns, :Ds], loc2[:Ns, :Ds]
    s1s, s2s = scale1[:Ns, :Ds], scale2[:Ns, :Ds]
    out_s = jax.block_until_ready(
        uncertainty_loss(l1s, s1s, l2s, s2s, lambda_unc=lambda_unc))
    ref_s = _reference(l1s, s1s, l2s, s2s, lambda_unc)
    assert jnp.allclose(out_s, ref_s, rtol=1e-5, atol=1e-5), (out_s, ref_s)

    print("KERNEL_OK")
</pallas_src>

<mosaic_0001>
module attributes {stable_mosaic.version = 11 : i64} {
  func.func @_row_stats_kernel(%arg0: i32, %arg1: memref<128x128xf32, #tpu.memory_space<vmem>>, %arg2: memref<128x128xf32, #tpu.memory_space<vmem>>, %arg3: memref<128x128xf32, #tpu.memory_space<vmem>>, %arg4: memref<128x128xf32, #tpu.memory_space<vmem>>, %arg5: memref<3x128xf32, #tpu.memory_space<vmem>>) attributes {dimension_semantics = [#tpu.dimension_semantics<parallel>], iteration_bounds = array<i64: 2>, scalar_prefetch = 0 : i64, scratch_operands = 0 : i64, tpu.core_type = #tpu.core_type<tc>, window_params = [{transform_indices = @transform_0, window_bounds = array<i64: 128, 128>}, {transform_indices = @transform_1, window_bounds = array<i64: 128, 128>}, {transform_indices = @transform_2, window_bounds = array<i64: 128, 128>}, {transform_indices = @transform_3, window_bounds = array<i64: 128, 128>}, {transform_indices = @transform_4, window_bounds = array<i64: 3, 128>}]} {
    %c0 = arith.constant 0 : index
    %c0_0 = arith.constant 0 : index
    %0 = vector.load %arg1[%c0, %c0_0] : memref<128x128xf32, #tpu.memory_space<vmem>>, vector<128x128xf32>
    %c0_1 = arith.constant 0 : index
    %c0_2 = arith.constant 0 : index
    %1 = vector.load %arg2[%c0_1, %c0_2] : memref<128x128xf32, #tpu.memory_space<vmem>>, vector<128x128xf32>
    %2 = arith.mulf %0, %1 : vector<128x128xf32>
    %cst = arith.constant dense<0.000000e+00> : vector<128xf32>
    %3 = vector.multi_reduction <add>, %2, %cst [1] : vector<128x128xf32> to vector<128xf32>
    %4 = vector.shape_cast %3 : vector<128xf32> to vector<128x1xf32>
    %5 = arith.mulf %0, %0 : vector<128x128xf32>
    %cst_3 = arith.constant dense<0.000000e+00> : vector<128xf32>
    %6 = vector.multi_reduction <add>, %5, %cst_3 [1] : vector<128x128xf32> to vector<128xf32>
    %7 = vector.shape_cast %6 : vector<128xf32> to vector<128x1xf32>
    %8 = arith.mulf %1, %1 : vector<128x128xf32>
    %cst_4 = arith.constant dense<0.000000e+00> : vector<128xf32>
    %9 = vector.multi_reduction <add>, %8, %cst_4 [1] : vector<128x128xf32> to vector<128xf32>
    %10 = vector.shape_cast %9 : vector<128xf32> to vector<128x1xf32>
    %cst_5 = arith.constant 1.000000e-24 : f32
    %11 = vector.broadcast %cst_5 : f32 to vector<128x1xf32>
    %12 = arith.maximumf %7, %11 : vector<128x1xf32>
    %13 = math.rsqrt %12 : vector<128x1xf32>
    %14 = arith.mulf %4, %13 : vector<128x1xf32>
    %cst_6 = arith.constant 1.000000e-24 : f32
    %15 = vector.broadcast %cst_6 : f32 to vector<128x1xf32>
    %16 = arith.maximumf %10, %15 : vector<128x1xf32>
    %17 = math.rsqrt %16 : vector<128x1xf32>
    %18 = arith.mulf %14, %17 : vector<128x1xf32>
    %c0_7 = arith.constant 0 : index
    %c0_8 = arith.constant 0 : index
    %19 = vector.load %arg3[%c0_7, %c0_8] : memref<128x128xf32, #tpu.memory_space<vmem>>, vector<128x128xf32>
    %cst_9 = arith.constant dense<0.000000e+00> : vector<128xf32>
    %20 = vector.multi_reduction <add>, %19, %cst_9 [1] : vector<128x128xf32> to vector<128xf32>
    %21 = vector.shape_cast %20 : vector<128xf32> to vector<128x1xf32>
    %cst_10 = arith.constant 1.280000e+02 : f32
    %22 = vector.broadcast %cst_10 : f32 to vector<128x1xf32>
    %23 = arith.divf %21, %22 : vector<128x1xf32>
    %c0_11 = arith.constant 0 : index
    %c0_12 = arith.constant 0 : index
    %24 = vector.load %arg4[%c0_11, %c0_12] : memref<128x128xf32, #tpu.memory_space<vmem>>, vector<128x128xf32>
    %cst_13 = arith.constant dense<0.000000e+00> : vector<128xf32>
    %25 = vector.multi_reduction <add>, %24, %cst_13 [1] : vector<128x128xf32> to vector<128xf32>
    %26 = vector.shape_cast %25 : vector<128xf32> to vector<128x1xf32>
    %cst_14 = arith.constant 1.280000e+02 : f32
    %27 = vector.broadcast %cst_14 : f32 to vector<128x1xf32>
    %28 = arith.divf %26, %27 : vector<128x1xf32>
    %29 = tpu.concatenate %18, %23, %28 in 1 : vector<128x1xf32>, vector<128x1xf32>, vector<128x1xf32> -> vector<128x3xf32>
    %30 = tpu.transpose %29, [1, 0] : vector<128x3xf32> -> vector<3x128xf32>
    %c0_15 = arith.constant 0 : index
    %c0_16 = arith.constant 0 : index
    %31 = vector.load %arg5[%c0_15, %c0_16] : memref<3x128xf32, #tpu.memory_space<vmem>>, vector<3x128xf32>
    tpu.vector_store %arg5[%c0_15, %c0_16], %30 {strides = array<i32>} : memref<3x128xf32, #tpu.memory_space<vmem>>, vector<3x128xf32>,
    return
  }
  func.func @transform_0(%arg0: i32) -> (i32, i32) {
    %c0_i32 = arith.constant 0 : i32
    %c0_i32_0 = arith.constant 0 : i32
    return %arg0, %c0_i32 : i32, i32
  }
  func.func @transform_1(%arg0: i32) -> (i32, i32) {
    %c0_i32 = arith.constant 0 : i32
    %c0_i32_0 = arith.constant 0 : i32
    return %arg0, %c0_i32 : i32, i32
  }
  func.func @transform_2(%arg0: i32) -> (i32, i32) {
    %c0_i32 = arith.constant 0 : i32
    %c0_i32_0 = arith.constant 0 : i32
    return %arg0, %c0_i32 : i32, i32
  }
  func.func @transform_3(%arg0: i32) -> (i32, i32) {
    %c0_i32 = arith.constant 0 : i32
    %c0_i32_0 = arith.constant 0 : i32
    return %arg0, %c0_i32 : i32, i32
  }
  func.func @transform_4(%arg0: i32) -> (i32, i32) {
    %c0_i32 = arith.constant 0 : i32
    %c0_i32_0 = arith.constant 0 : i32
    return %c0_i32, %arg0 : i32, i32
  }
}

</mosaic_0001>

<llo_original>
// kernel: tpu_custom_call.1
$region0: #{tpu_custom_call.1}
  #allocation0 [shape = 'u32[]', space=smem, size = 0x4, offset = 0x4, fixed_abs, tag = 'smem constant byte address 0x4 - core index']
  #allocation1 [shape = 'u32[144,128]{1,0:T(1,128)}', space=vmem, size = 0x12000, scoped, tag = 'internal scratch']
  %s0 = inlined_call_operand.hbm [shape: f32[256,128], index: 0, kind: input, shape index: {}]
  %s1 = inlined_call_operand.hbm [shape: f32[256,128], index: 1, kind: input, shape index: {}]
  %s2 = inlined_call_operand.hbm [shape: f32[256,128], index: 2, kind: input, shape index: {}]
  %s3 = inlined_call_operand.hbm [shape: f32[256,128], index: 3, kind: input, shape index: {}]
  %s4 = inlined_call_operand.hbm [shape: f32[3,256], index: 4, kind: output, shape index: {}]
  %s5 = sld [smem:[#allocation0]]
  $region65: #{tpu_custom_call.1} parent=0
    _
  %s7 = ssub.s32 1, %s5
  %s8 = scalar_select 0, %s7, %s5
  $region1: #{tpu_custom_call.1} parent=0
    #allocation2 [shape = 'u8[131072]{0}', space=vmem, size = 0x20000, scoped, tag = 'input window, operand 0']
    #allocation3 [shape = 's32[2]{0}', space=sflag, size = 0x8, scoped, tag = 'scoped memory for tpu_custom_call.1']
    #allocation4 [shape = 's32[2]{0}', space=sflag, size = 0x8, scoped, tag = 'scoped memory for tpu_custom_call.1']
    #allocation5 [shape = 'u8[131072]{0}', space=vmem, size = 0x20000, scoped, tag = 'input window, operand 1']
    #allocation6 [shape = 's32[2]{0}', space=sflag, size = 0x8, scoped, tag = 'scoped memory for tpu_custom_call.1']
    #allocation7 [shape = 'u8[131072]{0}', space=vmem, size = 0x20000, scoped, tag = 'input window, operand 2']
    #allocation8 [shape = 'u8[131072]{0}', space=vmem, size = 0x20000, scoped, tag = 'input window, operand 3']
    #allocation9 [shape = 's32[2]{0}', space=sflag, size = 0x8, scoped, tag = 'scoped memory for tpu_custom_call.1']
    #allocation10 [shape = 'u8[4096]{0}', space=vmem, size = 0x1000, scoped, tag = 'output window, operand 0']
    %9 = vsyncpa [#allocation3], 0
    %s10 = scalar_lea.sflag [#allocation3], 1
    %11 = vsyncpa %s10, 0
    %12 = vsyncpa [#allocation6], 0
    %s13 = scalar_lea.sflag [#allocation6], 1
    %14 = vsyncpa %s13, 0
    %15 = vsyncpa [#allocation9], 0
    %s16 = scalar_lea.sflag [#allocation9], 1
    %17 = vsyncpa %s16, 0
    %18 = vsyncpa [#allocation4], 0
    %s19 = scalar_lea.sflag [#allocation4], 1
    %20 = vsyncpa %s19, 0
    loop: start=0, step=1, limit=4
    $region2: #{tpu_custom_call.1} parent=1 // loop_pre_header
      _
    $region3: #{tpu_custom_call.1} parent=1 // loop_header
      %s22 = sphi 0, %s26
      %p23 = scmp.ge.s32.totalorder %s22, 4
      %s32 = sphi 0, %s34
      %s35 = sphi 0, %s32
      %s36 = sphi 0, %s35
      %s52 = sphi 0, %s36
      %s58 = sphi 0, %s60
      %s61 = sphi 0, %s58
      %s62 = sphi 0, %s61
      %s78 = sphi 0, %s62
      %s84 = sphi 0, %s86
      %s87 = sphi 0, %s84
      %s88 = sphi 0, %s87
      %s104 = sphi 0, %s88
      %s110 = sphi 0, %s112
      %s113 = sphi 0, %s110
      %s114 = sphi 0, %s113
      %s130 = sphi 0, %s114
      %s136 = sphi 0, %s138
      %s139 = sphi 0, %s136
      %s140 = sphi 0, %s139
      %s156 = sphi 0, %s140
    $region4: #{tpu_custom_call.1} parent=1 // loop_header_branch
      %25 = sbr.rel (%p23) target = $region8
    $region5: #{tpu_custom_call.1} parent=1 // loop_body
      %s27 = ssub.s32 %s22, 1
      %s28 = ssub.s32 %s22, 2
      %s29 = sadd.s32 %s22, 1
      %s30 = ssub.s32 %s22, %s29
      %p31 = scmp.eq.s32.totalorder %s30, 0
      %s33 = sadd.s32 %s32, 1
      %s34 = scalar_select %p31, %s32, %s33
      %p37 = pneg %p31
      %p38 = scmp.eq.s32.totalorder %s22, 1
      %p39 = por %p37, %p38
      %p40 = scmp.ne.s32.totalorder %s32, %s35
      %p41 = scmp.eq.s32.totalorder %s22, 0
      %p42 = por %p40, %p41
      %p43 = scmp.ne.s32.totalorder %s32, %s35
      %p44 = scmp.eq.s32.totalorder %s27, 1
      %p45 = por %p43, %p44
      %p46 = scmp.ne.s32.totalorder %s35, %s36
      %p47 = scmp.eq.s32.totalorder %s27, 0
      %p48 = por %p46, %p47
      %p49 = scmp.ne.s32.totalorder %s35, %s36
      %p50 = scmp.eq.s32.totalorder %s28, 1
      %p51 = por %p49, %p50
      %p53 = scmp.ne.s32.totalorder %s36, %s52
      %p54 = scmp.eq.s32.totalorder %s28, 0
      %p55 = por %p53, %p54
      %s56 = ssub.s32 %s22, %s29
      %p57 = scmp.eq.s32.totalorder %s56, 0
      %s59 = sadd.s32 %s58, 1
      %s60 = scalar_select %p57, %s58, %s59
      %p63 = pneg %p57
      %p64 = scmp.eq.s32.totalorder %s22, 1
      %p65 = por %p63, %p64
      %p66 = scmp.ne.s32.totalorder %s58, %s61
      %p67 = scmp.eq.s32.totalorder %s22, 0
      %p68 = por %p66, %p67
      %p69 = scmp.ne.s32.totalorder %s58, %s61
      %p70 = scmp.eq.s32.totalorder %s27, 1
      %p71 = por %p69, %p70
      %p72 = scmp.ne.s32.totalorder %s61, %s62
      %p73 = scmp.eq.s32.totalorder %s27, 0
      %p74 = por %p72, %p73
      %p75 = scmp.ne.s32.totalorder %s61, %s62
      %p76 = scmp.eq.s32.totalorder %s28, 1
      %p77 = por %p75, %p76
      %p79 = scmp.ne.s32.totalorder %s62, %s78
      %p80 = scmp.eq.s32.totalorder %s28, 0
      %p81 = por %p79, %p80
      %s82 = ssub.s32 %s22, %s29
      %p83 = scmp.eq.s32.totalorder %s82, 0
      %s85 = sadd.s32 %s84, 1
      %s86 = scalar_select %p83, %s84, %s85
      %p89 = pneg %p83
      %p90 = scmp.eq.s32.totalorder %s22, 1
      %p91 = por %p89, %p90
      %p92 = scmp.ne.s32.totalorder %s84, %s87
      %p93 = scmp.eq.s32.totalorder %s22, 0
      %p94 = por %p92, %p93
      %p95 = scmp.ne.s32.totalorder %s84, %s87
      %p96 = scmp.eq.s32.totalorder %s27, 1
      %p97 = por %p95, %p96
      %p98 = scmp.ne.s32.totalorder %s87, %s88
      %p99 = scmp.eq.s32.totalorder %s27, 0
      %p100 = por %p98, %p99
      %p101 = scmp.ne.s32.totalorder %s87, %s88
      %p102 = scmp.eq.s32.totalorder %s28, 1
      %p103 = por %p101, %p102
      %p105 = scmp.ne.s32.totalorder %s88, %s104
      %p106 = scmp.eq.s32.totalorder %s28, 0
      %p107 = por %p105, %p106
      %s108 = ssub.s32 %s22, %s29
      %p109 = scmp.eq.s32.totalorder %s108, 0
      %s111 = sadd.s32 %s110, 1
      %s112 = scalar_select %p109, %s110, %s111
      %p115 = pneg %p109
      %p116 = scmp.eq.s32.totalorder %s22, 1
      %p117 = por %p115, %p116
      %p118 = scmp.ne.s32.totalorder %s110, %s113
      %p119 = scmp.eq.s32.totalorder %s22, 0
      %p120 = por %p118, %p119
      %p121 = scmp.ne.s32.totalorder %s110, %s113
      %p122 = scmp.eq.s32.totalorder %s27, 1
      %p123 = por %p121, %p122
      %p124 = scmp.ne.s32.totalorder %s113, %s114
      %p125 = scmp.eq.s32.totalorder %s27, 0
      %p126 = por %p124, %p125
      %p127 = scmp.ne.s32.totalorder %s113, %s114
      %p128 = scmp.eq.s32.totalorder %s28, 1
      %p129 = por %p127, %p128
      %p131 = scmp.ne.s32.totalorder %s114, %s130
      %p132 = scmp.eq.s32.totalorder %s28, 0
      %p133 = por %p131, %p132
      %s134 = ssub.s32 %s22, %s29
      %p135 = scmp.eq.s32.totalorder %s134, 0
      %s137 = sadd.s32 %s136, 1
      %s138 = scalar_select %p135, %s136, %s137
      %p141 = pneg %p135
      %p142 = scmp.eq.s32.totalorder %s22, 1
      %p143 = por %p141, %p142
      %p144 = scmp.ne.s32.totalorder %s136, %s139
      %p145 = scmp.eq.s32.totalorder %s22, 0
      %p146 = por %p144, %p145
      %p147 = scmp.ne.s32.totalorder %s136, %s139
      %p148 = scmp.eq.s32.totalorder %s27, 1
      %p149 = por %p147, %p148
      %p150 = scmp.ne.s32.totalorder %s139, %s140
      %p151 = scmp.eq.s32.totalorder %s27, 0
      %p152 = por %p150, %p151
      %p153 = scmp.ne.s32.totalorder %s139, %s140
      %p154 = scmp.eq.s32.totalorder %s28, 1
      %p155 = por %p153, %p154
      %p157 = scmp.ne.s32.totalorder %s140, %s156
      %p158 = scmp.eq.s32.totalorder %s28, 0
      %p159 = por %p157, %p158
      %p160 = scmp.le.s32.totalorder 1, %s22
      %p161 = scmp.lt.s32.totalorder %s22, 3
      %p162 = pnand %p160, %p161
      %p163 = pneg %p162
      // Predicated region
      $region9: #{tpu_custom_call.1} parent=5 // pred_check
        _
      $region10: #{tpu_custom_call.1} parent=5 // pred_check_branch
        %165 = sbr.rel (%p162) target = $region12
      $region11: #{tpu_custom_call.1} parent=5 // pred_region
        %s166 = ssub.s32 %s22, 1
      $region12: #{tpu_custom_call.1} parent=5 // pred_fallthru
        _
      %p167 = scmp.lt.s32.totalorder %s22, 2
      // Predicated region
      $region13: #{tpu_custom_call.1} parent=5 // pred_check
        %p168 = pneg %p167
      $region14: #{tpu_custom_call.1} parent=5 // pred_check_branch
        %170 = sbr.rel (%p168) target = $region16
      $region15: #{tpu_custom_call.1} parent=5 // pred_region
        // Predicated region
        $region17: #{tpu_custom_call.1} parent=15 // pred_check
          %p171 = pneg %p42
        $region18: #{tpu_custom_call.1} parent=15 // pred_check_branch
          %173 = sbr.rel (%p171) target = $region20
        $region19: #{tpu_custom_call.1} parent=15 // pred_region
          %s174 = sand.u32 %s32, 1
          %s175 = scalar_lea.sflag [#allocation3], %s174
          %s176 = sand.u32 %s32, 1
          %s177 = smul.addr %s176, 128
          %s178 = scalar_lea.vmem [#allocation2], %s177
          %s179 = smul.u32 16, %s22
          %s181 = ssub.s32 2048, 2048
          %182 = vsyncadd %s175, %s181
          %s183 = smul.addr %s179, 128
          %s184 = scalar_lea.hbm %s0, %s183
          %s185 = sshll.u32 %s178, 4
          %s186 = int_to_ptr.vmem [resolvable:$true] %s185
          %191 = dma.hbm_to_vmem [thread:$0]  %s184, 2048, %s186, %s175, 128, 128, 8
        $region20: #{tpu_custom_call.1} parent=15 // pred_fallthru
          _
        // Predicated region
        $region21: #{tpu_custom_call.1} parent=15 // pred_check
          %p192 = pneg %p68
        $region22: #{tpu_custom_call.1} parent=15 // pred_check_branch
          %194 = sbr.rel (%p192) target = $region24
        $region23: #{tpu_custom_call.1} parent=15 // pred_region
          %s195 = sand.u32 %s22, 1
          %s196 = scalar_lea.sflag [#allocation6], %s195
          %s197 = sand.u32 %s58, 1
          %s198 = smul.addr %s197, 128
          %s199 = scalar_lea.vmem [#allocation5], %s198
          %s200 = smul.u32 16, %s22
          %s202 = ssub.s32 2048, 2048
          %203 = vsyncadd %s196, %s202
          %s204 = smul.addr %s200, 128
          %s205 = scalar_lea.hbm %s1, %s204
          %s206 = sshll.u32 %s199, 4
          %s207 = int_to_ptr.vmem [resolvable:$true] %s206
          %212 = dma.hbm_to_vmem [thread:$0]  %s205, 2048, %s207, %s196, 128, 128, 8
        $region24: #{tpu_custom_call.1} parent=15 // pred_fallthru
          _
        // Predicated region
        $region25: #{tpu_custom_call.1} parent=15 // pred_check
          %p213 = pneg %p94
        $region26: #{tpu_custom_call.1} parent=15 // pred_check_branch
          %215 = sbr.rel (%p213) target = $region28
        $region27: #{tpu_custom_call.1} parent=15 // pred_region
          %s216 = sand.u32 %s22, 1
          %s217 = scalar_lea.sflag [#allocation6], %s216
          %s218 = sand.u32 %s84, 1
          %s219 = smul.addr %s218, 128
          %s220 = scalar_lea.vmem [#allocation7], %s219
          %s221 = smul.u32 16, %s22
          %s223 = ssub.s32 2048, 2048
          %224 = vsyncadd %s217, %s223
          %s225 = smul.addr %s221, 128
          %s226 = scalar_lea.hbm %s2, %s225
          %s227 = sshll.u32 %s220, 4
          %s228 = int_to_ptr.vmem [resolvable:$true] %s227
          %233 = dma.hbm_to_vmem [thread:$0]  %s226, 2048, %s228, %s217, 128, 128, 8
        $region28: #{tpu_custom_call.1} parent=15 // pred_fallthru
          _
        // Predicated region
        $region29: #{tpu_custom_call.1} parent=15 // pred_check
          %p234 = pneg %p120
        $region30: #{tpu_custom_call.1} parent=15 // pred_check_branch
          %236 = sbr.rel (%p234) target = $region32
        $region31: #{tpu_custom_call.1} parent=15 // pred_region
          %s237 = sand.u32 %s110, 1
          %s238 = scalar_lea.sflag [#allocation9], %s237
          %s239 = sand.u32 %s110, 1
          %s240 = smul.addr %s239, 128
          %s241 = scalar_lea.vmem [#allocation8], %s240
          %s242 = smul.u32 16, %s22
          %s244 = ssub.s32 2048, 2048
          %245 = vsyncadd %s238, %s244
          %s246 = smul.addr %s242, 128
          %s247 = scalar_lea.hbm %s3, %s246
          %s248 = sshll.u32 %s241, 4
          %s249 = int_to_ptr.vmem [resolvable:$true] %s248
          %254 = dma.hbm_to_vmem [thread:$0]  %s247, 2048, %s249, %s238, 128, 128, 8
        $region32: #{tpu_custom_call.1} parent=15 // pred_fallthru
          _
      $region16: #{tpu_custom_call.1} parent=5 // pred_fallthru
        _
      %p255 = scmp.le.s32.totalorder 1, %s22
      %p256 = scmp.lt.s32.totalorder %s22, 3
      %p257 = pnand %p255, %p256
      %p258 = pneg %p257
      // Predicated region
      $region33: #{tpu_custom_call.1} parent=5 // pred_check
        _
      $region34: #{tpu_custom_call.1} parent=5 // pred_check_branch
        %260 = sbr.rel (%p257) target = $region36
      $region35: #{tpu_custom_call.1} parent=5 // pred_region
        %s261 = ssub.s32 %s22, 1
        %s262 = sand.u32 %s35, 1
        %s263 = scalar_lea.sflag [#allocation3], %s262
        %s264 = sand.u32 %s35, 1
        %s265 = smul.addr %s264, 128
        %s266 = scalar_lea.vmem [#allocation2], %s265
        // Predicated region
        $region37: #{tpu_custom_call.1} parent=35 // pred_check
          %p267 = pneg %p48
        $region38: #{tpu_custom_call.1} parent=35 // pred_check_branch
          %269 = sbr.rel (%p267) target = $region40
        $region39: #{tpu_custom_call.1} parent=35 // pred_region
          %270 = dma.done %s263, 2048
        $region40: #{tpu_custom_call.1} parent=35 // pred_fallthru
          _
        %s271 = sand.u32 %s27, 1
        %s272 = scalar_lea.sflag [#allocation6], %s271
        %s273 = sand.u32 %s61, 1
        %s274 = smul.addr %s273, 128
        %s275 = scalar_lea.vmem [#allocation5], %s274
        // Predicated region
        $region41: #{tpu_custom_call.1} parent=35 // pred_check
          %p276 = pneg %p74
        $region42: #{tpu_custom_call.1} parent=35 // pred_check_branch
          %278 = sbr.rel (%p276) target = $region44
        $region43: #{tpu_custom_call.1} parent=35 // pred_region
          %279 = dma.done %s272, 2048
        $region44: #{tpu_custom_call.1} parent=35 // pred_fallthru
          _
        %s280 = sand.u32 %s27, 1
        %s281 = scalar_lea.sflag [#allocation6], %s280
        %s282 = sand.u32 %s87, 1
        %s283 = smul.addr %s282, 128
        %s284 = scalar_lea.vmem [#allocation7], %s283
        // Predicated region
        $region45: #{tpu_custom_call.1} parent=35 // pred_check
          %p285 = pneg %p100
        $region46: #{tpu_custom_call.1} parent=35 // pred_check_branch
          %287 = sbr.rel (%p285) target = $region48
        $region47: #{tpu_custom_call.1} parent=35 // pred_region
          %288 = dma.done %s281, 2048
        $region48: #{tpu_custom_call.1} parent=35 // pred_fallthru
          _
        %s289 = sand.u32 %s113, 1
        %s290 = scalar_lea.sflag [#allocation9], %s289
        %s291 = sand.u32 %s113, 1
        %s292 = smul.addr %s291, 128
        %s293 = scalar_lea.vmem [#allocation8], %s292
        // Predicated region
        $region49: #{tpu_custom_call.1} parent=35 // pred_check
          %p294 = pneg %p126
        $region50: #{tpu_custom_call.1} parent=35 // pred_check_branch
          %296 = sbr.rel (%p294) target = $region52
        $region51: #{tpu_custom_call.1} parent=35 // pred_region
          %297 = dma.done %s290, 2048
        $region52: #{tpu_custom_call.1} parent=35 // pred_fallthru
          _
        %s298 = sand.u32 %s35, 1
        %s299 = scalar_lea.sflag [#allocation3], %s298
        %s300 = sand.u32 %s35, 1
        %s301 = smul.addr %s300, 128
        %s302 = scalar_lea.vmem [#allocation2], %s301
        %p303 = pneg %p48
        %p304 = pneg %p45
        %s305 = sand.u32 %s27, 1
        %s306 = scalar_lea.sflag [#allocation6], %s305
        %s307 = sand.u32 %s61, 1
        %s308 = smul.addr %s307, 128
        %s309 = scalar_lea.vmem [#allocation5], %s308
        %p310 = pneg %p74
        %p311 = pneg %p71
        %s312 = sand.u32 %s27, 1
        %s313 = scalar_lea.sflag [#allocation6], %s312
        %s314 = sand.u32 %s87, 1
        %s315 = smul.addr %s314, 128
        %s316 = scalar_lea.vmem [#allocation7], %s315
        %p317 = pneg %p100
        %p318 = pneg %p97
        %s319 = sand.u32 %s113, 1
        %s320 = scalar_lea.sflag [#allocation9], %s319
        %s321 = sand.u32 %s113, 1
        %s322 = smul.addr %s321, 128
        %s323 = scalar_lea.vmem [#allocation8], %s322
        %p324 = pneg %p126
        %p325 = pneg %p123
        %p326 = pneg %p152
        %p327 = pneg %p149
        %s328 = sand.u32 %s139, 1
        %s329 = scalar_lea.sflag [#allocation4], %s328
        %s330 = sand.u32 %s139, 1
        %s331 = smul.addr %s330, 4
        %s332 = scalar_lea.vmem [#allocation10], %s331
        %s333 = smul.u32 16, %s27
        %s334 = smul.u32 16, %s27
        %s335 = smul.u32 16, %s27
        %s336 = smul.u32 16, %s27
        %v337 = vld [vmem:[%s266] sm:$0xff]
        %v338 = vld [vmem:[%s266 + $0x8] sm:$0xff]
        %v339 = vld [vmem:[%s266 + $0x10] sm:$0xff]
        %v340 = vld [vmem:[%s266 + $0x18] sm:$0xff]
        %v341 = vld [vmem:[%s266 + $0x20] sm:$0xff]
        %v342 = vld [vmem:[%s266 + $0x28] sm:$0xff]
        %v343 = vld [vmem:[%s266 + $0x30] sm:$0xff]
        %v344 = vld [vmem:[%s266 + $0x38] sm:$0xff]
        %v345 = vld [vmem:[%s266 + $0x40] sm:$0xff]
        %v346 = vld [vmem:[%s266 + $0x48] sm:$0xff]
        %v347 = vld [vmem:[%s266 + $0x50] sm:$0xff]
        %v348 = vld [vmem:[%s266 + $0x58] sm:$0xff]
        %v349 = vld [vmem:[%s266 + $0x60] sm:$0xff]
        %v350 = vld [vmem:[%s266 + $0x68] sm:$0xff]
        %v351 = vld [vmem:[%s266 + $0x70] sm:$0xff]
        %v352 = vld [vmem:[%s266 + $0x78] sm:$0xff]
        %v353 = vld [vmem:[%s275] sm:$0xff]
        %v354 = vld [vmem:[%s275 + $0x8] sm:$0xff]
        %v355 = vld [vmem:[%s275 + $0x10] sm:$0xff]
        %v356 = vld [vmem:[%s275 + $0x18] sm:$0xff]
        %v357 = vld [vmem:[%s275 + $0x20] sm:$0xff]
        %v358 = vld [vmem:[%s275 + $0x28] sm:$0xff]
        %v359 = vld [vmem:[%s275 + $0x30] sm:$0xff]
        %v360 = vld [vmem:[%s275 + $0x38] sm:$0xff]
        %v361 = vld [vmem:[%s275 + $0x40] sm:$0xff]
        %v362 = vld [vmem:[%s275 + $0x48] sm:$0xff]
        %v363 = vld [vmem:[%s275 + $0x50] sm:$0xff]
        %v364 = vld [vmem:[%s275 + $0x58] sm:$0xff]
        %v365 = vld [vmem:[%s275 + $0x60] sm:$0xff]
        %v366 = vld [vmem:[%s275 + $0x68] sm:$0xff]
        %v367 = vld [vmem:[%s275 + $0x70] sm:$0xff]
        %v368 = vld [vmem:[%s275 + $0x78] sm:$0xff]
        %v369 = vmul.f32 %v337, %v353
        %v370 = vmul.f32 %v338, %v354
        %v371 = vmul.f32 %v339, %v355
        %v372 = vmul.f32 %v340, %v356
        %v373 = vmul.f32 %v341, %v357
        %v374 = vmul.f32 %v342, %v358
        %v375 = vmul.f32 %v343, %v359
        %v376 = vmul.f32 %v344, %v360
        %v377 = vmul.f32 %v345, %v361
        %v378 = vmul.f32 %v346, %v362
        %v379 = vmul.f32 %v347, %v363
        %v380 = vmul.f32 %v348, %v364
        %v381 = vmul.f32 %v349, %v365
        %v382 = vmul.f32 %v350, %v366
        %v383 = vmul.f32 %v351, %v367
        %v384 = vmul.f32 %v352, %v368
        %385 = vadd.xlane.f32.xlu0 %v369
        %v386 = vpop.xlane.xlu0 %385
        %387 = vadd.xlane.f32.xlu0 %v370
        %v388 = vpop.xlane.xlu0 %387
        %389 = vadd.xlane.f32.xlu0 %v371
        %v390 = vpop.xlane.xlu0 %389
        %391 = vadd.xlane.f32.xlu0 %v372
        %v392 = vpop.xlane.xlu0 %391
        %393 = vadd.xlane.f32.xlu0 %v373
        %v394 = vpop.xlane.xlu0 %393
        %395 = vadd.xlane.f32.xlu0 %v374
        %v396 = vpop.xlane.xlu0 %395
        %397 = vadd.xlane.f32.xlu0 %v375
        %v398 = vpop.xlane.xlu0 %397
        %399 = vadd.xlane.f32.xlu0 %v376
        %v400 = vpop.xlane.xlu0 %399
        %401 = vadd.xlane.f32.xlu0 %v377
        %v402 = vpop.xlane.xlu0 %401
        %403 = vadd.xlane.f32.xlu0 %v378
        %v404 = vpop.xlane.xlu0 %403
        %405 = vadd.xlane.f32.xlu0 %v379
        %v406 = vpop.xlane.xlu0 %405
        %407 = vadd.xlane.f32.xlu0 %v380
        %v408 = vpop.xlane.xlu0 %407
        %409 = vadd.xlane.f32.xlu0 %v381
        %v410 = vpop.xlane.xlu0 %409
        %411 = vadd.xlane.f32.xlu0 %v382
        %v412 = vpop.xlane.xlu0 %411
        %413 = vadd.xlane.f32.xlu0 %v383
        %v414 = vpop.xlane.xlu0 %413
        %415 = vadd.xlane.f32.xlu0 %v384
        %v416 = vpop.xlane.xlu0 %415
        %v417 = vmul.f32 %v337, %v337
        %v418 = vmul.f32 %v338, %v338
        %v419 = vmul.f32 %v339, %v339
        %v420 = vmul.f32 %v340, %v340
        %v421 = vmul.f32 %v341, %v341
        %v422 = vmul.f32 %v342, %v342
        %v423 = vmul.f32 %v343, %v343
        %v424 = vmul.f32 %v344, %v344
        %v425 = vmul.f32 %v345, %v345
        %v426 = vmul.f32 %v346, %v346
        %v427 = vmul.f32 %v347, %v347
        %v428 = vmul.f32 %v348, %v348
        %v429 = vmul.f32 %v349, %v349
        %v430 = vmul.f32 %v350, %v350
        %v431 = vmul.f32 %v351, %v351
        %v432 = vmul.f32 %v352, %v352
        %433 = vadd.xlane.f32.xlu0 %v417
        %v434 = vpop.xlane.xlu0 %433
        %435 = vadd.xlane.f32.xlu0 %v418
        %v436 = vpop.xlane.xlu0 %435
        %437 = vadd.xlane.f32.xlu0 %v419
        %v438 = vpop.xlane.xlu0 %437
        %439 = vadd.xlane.f32.xlu0 %v420
        %v440 = vpop.xlane.xlu0 %439
        %441 = vadd.xlane.f32.xlu0 %v421
        %v442 = vpop.xlane.xlu0 %441
        %443 = vadd.xlane.f32.xlu0 %v422
        %v444 = vpop.xlane.xlu0 %443
        %445 = vadd.xlane.f32.xlu0 %v423
        %v446 = vpop.xlane.xlu0 %445
        %447 = vadd.xlane.f32.xlu0 %v424
        %v448 = vpop.xlane.xlu0 %447
        %449 = vadd.xlane.f32.xlu0 %v425
        %v450 = vpop.xlane.xlu0 %449
        %451 = vadd.xlane.f32.xlu0 %v426
        %v452 = vpop.xlane.xlu0 %451
        %453 = vadd.xlane.f32.xlu0 %v427
        %v454 = vpop.xlane.xlu0 %453
        %455 = vadd.xlane.f32.xlu0 %v428
        %v456 = vpop.xlane.xlu0 %455
        %457 = vadd.xlane.f32.xlu0 %v429
        %v458 = vpop.xlane.xlu0 %457
        %459 = vadd.xlane.f32.xlu0 %v430
        %v460 = vpop.xlane.xlu0 %459
        %461 = vadd.xlane.f32.xlu0 %v431
        %v462 = vpop.xlane.xlu0 %461
        %463 = vadd.xlane.f32.xlu0 %v432
        %v464 = vpop.xlane.xlu0 %463
        %v465 = vmul.f32 %v353, %v353
        %v466 = vmul.f32 %v354, %v354
        %v467 = vmul.f32 %v355, %v355
        %v468 = vmul.f32 %v356, %v356
        %v469 = vmul.f32 %v357, %v357
        %v470 = vmul.f32 %v358, %v358
        %v471 = vmul.f32 %v359, %v359
        %v472 = vmul.f32 %v360, %v360
        %v473 = vmul.f32 %v361, %v361
        %v474 = vmul.f32 %v362, %v362
        %v475 = vmul.f32 %v363, %v363
        %v476 = vmul.f32 %v364, %v364
        %v477 = vmul.f32 %v365, %v365
        %v478 = vmul.f32 %v366, %v366
        %v479 = vmul.f32 %v367, %v367
        %v480 = vmul.f32 %v368, %v368
        %481 = vadd.xlane.f32.xlu0 %v465
        %v482 = vpop.xlane.xlu0 %481
        %483 = vadd.xlane.f32.xlu0 %v466
        %v484 = vpop.xlane.xlu0 %483
        %485 = vadd.xlane.f32.xlu0 %v467
        %v486 = vpop.xlane.xlu0 %485
        %487 = vadd.xlane.f32.xlu0 %v468
        %v488 = vpop.xlane.xlu0 %487
        %489 = vadd.xlane.f32.xlu0 %v469
        %v490 = vpop.xlane.xlu0 %489
        %491 = vadd.xlane.f32.xlu0 %v470
        %v492 = vpop.xlane.xlu0 %491
        %493 = vadd.xlane.f32.xlu0 %v471
        %v494 = vpop.xlane.xlu0 %493
        %495 = vadd.xlane.f32.xlu0 %v472
        %v496 = vpop.xlane.xlu0 %495
        %497 = vadd.xlane.f32.xlu0 %v473
        %v498 = vpop.xlane.xlu0 %497
        %499 = vadd.xlane.f32.xlu0 %v474
        %v500 = vpop.xlane.xlu0 %499
        %501 = vadd.xlane.f32.xlu0 %v475
        %v502 = vpop.xlane.xlu0 %501
        %503 = vadd.xlane.f32.xlu0 %v476
        %v504 = vpop.xlane.xlu0 %503
        %505 = vadd.xlane.f32.xlu0 %v477
        %v506 = vpop.xlane.xlu0 %505
        %507 = vadd.xlane.f32.xlu0 %v478
        %v508 = vpop.xlane.xlu0 %507
        %509 = vadd.xlane.f32.xlu0 %v479
        %v510 = vpop.xlane.xlu0 %509
        %511 = vadd.xlane.f32.xlu0 %v480
        %v512 = vpop.xlane.xlu0 %511
        %v513 = vmax.f32 %v434, 1e-24
        %v514 = vmax.f32 %v436, 1e-24
        %v515 = vmax.f32 %v438, 1e-24
        %v516 = vmax.f32 %v440, 1e-24
        %v517 = vmax.f32 %v442, 1e-24
        %v518 = vmax.f32 %v444, 1e-24
        %v519 = vmax.f32 %v446, 1e-24
        %v520 = vmax.f32 %v448, 1e-24
        %v521 = vmax.f32 %v450, 1e-24
        %v522 = vmax.f32 %v452, 1e-24
        %v523 = vmax.f32 %v454, 1e-24
        %v524 = vmax.f32 %v456, 1e-24
        %v525 = vmax.f32 %v458, 1e-24
        %v526 = vmax.f32 %v460, 1e-24
        %v527 = vmax.f32 %v462, 1e-24
        %v528 = vmax.f32 %v464, 1e-24
        %v529 = vrsqrt.pop %v513
        %v530 = vrsqrt.pop %v514
        %v531 = vrsqrt.pop %v515
        %v532 = vrsqrt.pop %v516
        %v533 = vrsqrt.pop %v517
        %v534 = vrsqrt.pop %v518
        %v535 = vrsqrt.pop %v519
        %v536 = vrsqrt.pop %v520
        %v537 = vrsqrt.pop %v521
        %v538 = vrsqrt.pop %v522
        %v539 = vrsqrt.pop %v523
        %v540 = vrsqrt.pop %v524
        %v541 = vrsqrt.pop %v525
        %v542 = vrsqrt.pop %v526
        %v543 = vrsqrt.pop %v527
        %v544 = vrsqrt.pop %v528
        %v545 = vmul.f32 %v386, %v529
        %v546 = vmul.f32 %v388, %v530
        %v547 = vmul.f32 %v390, %v531
        %v548 = vmul.f32 %v392, %v532
        %v549 = vmul.f32 %v394, %v533
        %v550 = vmul.f32 %v396, %v534
        %v551 = vmul.f32 %v398, %v535
        %v552 = vmul.f32 %v400, %v536
        %v553 = vmul.f32 %v402, %v537
        %v554 = vmul.f32 %v404, %v538
        %v555 = vmul.f32 %v406, %v539
        %v556 = vmul.f32 %v408, %v540
        %v557 = vmul.f32 %v410, %v541
        %v558 = vmul.f32 %v412, %v542
        %v559 = vmul.f32 %v414, %v543
        %v560 = vmul.f32 %v416, %v544
        %v561 = vmax.f32 %v482, 1e-24
        %v562 = vmax.f32 %v484, 1e-24
        %v563 = vmax.f32 %v486, 1e-24
        %v564 = vmax.f32 %v488, 1e-24
        %v565 = vmax.f32 %v490, 1e-24
        %v566 = vmax.f32 %v492, 1e-24
        %v567 = vmax.f32 %v494, 1e-24
        %v568 = vmax.f32 %v496, 1e-24
        %v569 = vmax.f32 %v498, 1e-24
        %v570 = vmax.f32 %v500, 1e-24
        %v571 = vmax.f32 %v502, 1e-24
        %v572 = vmax.f32 %v504, 1e-24
        %v573 = vmax.f32 %v506, 1e-24
        %v574 = vmax.f32 %v508, 1e-24
        %v575 = vmax.f32 %v510, 1e-24
        %v576 = vmax.f32 %v512, 1e-24
        %v577 = vrsqrt.pop %v561
        %v578 = vrsqrt.pop %v562
        %v579 = vrsqrt.pop %v563
        %v580 = vrsqrt.pop %v564
        %v581 = vrsqrt.pop %v565
        %v582 = vrsqrt.pop %v566
        %v583 = vrsqrt.pop %v567
        %v584 = vrsqrt.pop %v568
        %v585 = vrsqrt.pop %v569
        %v586 = vrsqrt.pop %v570
        %v587 = vrsqrt.pop %v571
        %v588 = vrsqrt.pop %v572
        %v589 = vrsqrt.pop %v573
        %v590 = vrsqrt.pop %v574
        %v591 = vrsqrt.pop %v575
        %v592 = vrsqrt.pop %v576
        %v593 = vmul.f32 %v545, %v577
        %v594 = vmul.f32 %v546, %v578
        %v595 = vmul.f32 %v547, %v579
        %v596 = vmul.f32 %v548, %v580
        %v597 = vmul.f32 %v549, %v581
        %v598 = vmul.f32 %v550, %v582
        %v599 = vmul.f32 %v551, %v583
        %v600 = vmul.f32 %v552, %v584
        %v601 = vmul.f32 %v553, %v585
        %v602 = vmul.f32 %v554, %v586
        %v603 = vmul.f32 %v555, %v587
        %v604 = vmul.f32 %v556, %v588
        %v605 = vmul.f32 %v557, %v589
        %v606 = vmul.f32 %v558, %v590
        %v607 = vmul.f32 %v559, %v591
        %v608 = vmul.f32 %v560, %v592
        %v609 = vld [vmem:[%s284] sm:$0xff]
        %v610 = vld [vmem:[%s284 + $0x8] sm:$0xff]
        %v611 = vld [vmem:[%s284 + $0x10] sm:$0xff]
        %v612 = vld [vmem:[%s284 + $0x18] sm:$0xff]
        %v613 = vld [vmem:[%s284 + $0x20] sm:$0xff]
        %v614 = vld [vmem:[%s284 + $0x28] sm:$0xff]
        %v615 = vld [vmem:[%s284 + $0x30] sm:$0xff]
        %v616 = vld [vmem:[%s284 + $0x38] sm:$0xff]
        %v617 = vld [vmem:[%s284 + $0x40] sm:$0xff]
        %v618 = vld [vmem:[%s284 + $0x48] sm:$0xff]
        %v619 = vld [vmem:[%s284 + $0x50] sm:$0xff]
        %v620 = vld [vmem:[%s284 + $0x58] sm:$0xff]
        %v621 = vld [vmem:[%s284 + $0x60] sm:$0xff]
        %v622 = vld [vmem:[%s284 + $0x68] sm:$0xff]
        %v623 = vld [vmem:[%s284 + $0x70] sm:$0xff]
        %v624 = vld [vmem:[%s284 + $0x78] sm:$0xff]
        %625 = vadd.xlane.f32.xlu0 %v609
        %v626 = vpop.xlane.xlu0 %625
        %627 = vadd.xlane.f32.xlu0 %v610
        %v628 = vpop.xlane.xlu0 %627
        %629 = vadd.xlane.f32.xlu0 %v611
        %v630 = vpop.xlane.xlu0 %629
        %631 = vadd.xlane.f32.xlu0 %v612
        %v632 = vpop.xlane.xlu0 %631
        %633 = vadd.xlane.f32.xlu0 %v613
        %v634 = vpop.xlane.xlu0 %633
        %635 = vadd.xlane.f32.xlu0 %v614
        %v636 = vpop.xlane.xlu0 %635
        %637 = vadd.xlane.f32.xlu0 %v615
        %v638 = vpop.xlane.xlu0 %637
        %639 = vadd.xlane.f32.xlu0 %v616
        %v640 = vpop.xlane.xlu0 %639
        %641 = vadd.xlane.f32.xlu0 %v617
        %v642 = vpop.xlane.xlu0 %641
        %643 = vadd.xlane.f32.xlu0 %v618
        %v644 = vpop.xlane.xlu0 %643
        %645 = vadd.xlane.f32.xlu0 %v619
        %v646 = vpop.xlane.xlu0 %645
        %647 = vadd.xlane.f32.xlu0 %v620
        %v648 = vpop.xlane.xlu0 %647
        %649 = vadd.xlane.f32.xlu0 %v621
        %v650 = vpop.xlane.xlu0 %649
        %651 = vadd.xlane.f32.xlu0 %v622
        %v652 = vpop.xlane.xlu0 %651
        %653 = vadd.xlane.f32.xlu0 %v623
        %v654 = vpop.xlane.xlu0 %653
        %655 = vadd.xlane.f32.xlu0 %v624
        %v656 = vpop.xlane.xlu0 %655
        %v657 = vrcp.pop 128.0
        %v658 = vmul.f32 %v626, %v657
        %v659 = vmul.f32 %v628, %v657
        %v660 = vmul.f32 %v630, %v657
        %v661 = vmul.f32 %v632, %v657
        %v662 = vmul.f32 %v634, %v657
        %v663 = vmul.f32 %v636, %v657
        %v664 = vmul.f32 %v638, %v657
        %v665 = vmul.f32 %v640, %v657
        %v666 = vmul.f32 %v642, %v657
        %v667 = vmul.f32 %v644, %v657
        %v668 = vmul.f32 %v646, %v657
        %v669 = vmul.f32 %v648, %v657
        %v670 = vmul.f32 %v650, %v657
        %v671 = vmul.f32 %v652, %v657
        %v672 = vmul.f32 %v654, %v657
        %v673 = vmul.f32 %v656, %v657
        %v674 = vld [vmem:[%s293] sm:$0xff]
        %v675 = vld [vmem:[%s293 + $0x8] sm:$0xff]
        %v676 = vld [vmem:[%s293 + $0x10] sm:$0xff]
        %v677 = vld [vmem:[%s293 + $0x18] sm:$0xff]
        %v678 = vld [vmem:[%s293 + $0x20] sm:$0xff]
        %v679 = vld [vmem:[%s293 + $0x28] sm:$0xff]
        %v680 = vld [vmem:[%s293 + $0x30] sm:$0xff]
        %v681 = vld [vmem:[%s293 + $0x38] sm:$0xff]
        %v682 = vld [vmem:[%s293 + $0x40] sm:$0xff]
        %v683 = vld [vmem:[%s293 + $0x48] sm:$0xff]
        %v684 = vld [vmem:[%s293 + $0x50] sm:$0xff]
        %v685 = vld [vmem:[%s293 + $0x58] sm:$0xff]
        %v686 = vld [vmem:[%s293 + $0x60] sm:$0xff]
        %v687 = vld [vmem:[%s293 + $0x68] sm:$0xff]
        %v688 = vld [vmem:[%s293 + $0x70] sm:$0xff]
        %v689 = vld [vmem:[%s293 + $0x78] sm:$0xff]
        %690 = vadd.xlane.f32.xlu0 %v674
        %v691 = vpop.xlane.xlu0 %690
        %692 = vadd.xlane.f32.xlu0 %v675
        %v693 = vpop.xlane.xlu0 %692
        %694 = vadd.xlane.f32.xlu0 %v676
        %v695 = vpop.xlane.xlu0 %694
        %696 = vadd.xlane.f32.xlu0 %v677
        %v697 = vpop.xlane.xlu0 %696
        %698 = vadd.xlane.f32.xlu0 %v678
        %v699 = vpop.xlane.xlu0 %698
        %700 = vadd.xlane.f32.xlu0 %v679
        %v701 = vpop.xlane.xlu0 %700
        %702 = vadd.xlane.f32.xlu0 %v680
        %v703 = vpop.xlane.xlu0 %702
        %704 = vadd.xlane.f32.xlu0 %v681
        %v705 = vpop.xlane.xlu0 %704
        %706 = vadd.xlane.f32.xlu0 %v682
        %v707 = vpop.xlane.xlu0 %706
        %708 = vadd.xlane.f32.xlu0 %v683
        %v709 = vpop.xlane.xlu0 %708
        %710 = vadd.xlane.f32.xlu0 %v684
        %v711 = vpop.xlane.xlu0 %710
        %712 = vadd.xlane.f32.xlu0 %v685
        %v713 = vpop.xlane.xlu0 %712
        %714 = vadd.xlane.f32.xlu0 %v686
        %v715 = vpop.xlane.xlu0 %714
        %716 = vadd.xlane.f32.xlu0 %v687
        %v717 = vpop.xlane.xlu0 %716
        %718 = vadd.xlane.f32.xlu0 %v688
        %v719 = vpop.xlane.xlu0 %718
        %720 = vadd.xlane.f32.xlu0 %v689
        %v721 = vpop.xlane.xlu0 %720
        %v722 = vmul.f32 %v691, %v657
        %v723 = vmul.f32 %v693, %v657
        %v724 = vmul.f32 %v695, %v657
        %v725 = vmul.f32 %v697, %v657
        %v726 = vmul.f32 %v699, %v657
        %v727 = vmul.f32 %v701, %v657
        %v728 = vmul.f32 %v703, %v657
        %v729 = vmul.f32 %v705, %v657
        %v730 = vmul.f32 %v707, %v657
        %v731 = vmul.f32 %v709, %v657
        %v732 = vmul.f32 %v711, %v657
        %v733 = vmul.f32 %v713, %v657
        %v734 = vmul.f32 %v715, %v657
        %v735 = vmul.f32 %v717, %v657
        %v736 = vmul.f32 %v719, %v657
        %v737 = vmul.f32 %v721, %v657
        %vm738 = vcmask 7168
        %v739 = vsel %vm738, %v593, %v658
        %v740 = vsel %vm738, %v594, %v659
        %v741 = vsel %vm738, %v595, %v660
        %v742 = vsel %vm738, %v596, %v661
        %v743 = vsel %vm738, %v597, %v662
        %v744 = vsel %vm738, %v598, %v663
        %v745 = vsel %vm738, %v599, %v664
        %v746 = vsel %vm738, %v600, %v665
        %v747 = vsel %vm738, %v601, %v666
        %v748 = vsel %vm738, %v602, %v667
        %v749 = vsel %vm738, %v603, %v668
        %v750 = vsel %vm738, %v604, %v669
        %v751 = vsel %vm738, %v605, %v670
        %v752 = vsel %vm738, %v606, %v671
        %v753 = vsel %vm738, %v607, %v672
        %v754 = vsel %vm738, %v608, %v673
        %vm755 = vcmask 15360
        %v756 = vsel %vm755, %v739, %v722
        %v757 = vsel %vm755, %v740, %v723
        %v758 = vsel %vm755, %v741, %v724
        %v759 = vsel %vm755, %v742, %v725
        %v760 = vsel %vm755, %v743, %v726
        %v761 = vsel %vm755, %v744, %v727
        %v762 = vsel %vm755, %v745, %v728
        %v763 = vsel %vm755, %v746, %v729
        %v764 = vsel %vm755, %v747, %v730
        %v765 = vsel %vm755, %v748, %v731
        %v766 = vsel %vm755, %v749, %v732
        %v767 = vsel %vm755, %v750, %v733
        %v768 = vsel %vm755, %v751, %v734
        %v769 = vsel %vm755, %v752, %v735
        %v770 = vsel %vm755, %v753, %v736
        %v771 = vsel %vm755, %v754, %v737
        %772 = vxpose.xlu0.b32.start [1/16] %v756, 128
        %773 = vxpose.xlu0.b32.cont [2/16] %v757, 128
        %774 = vxpose.xlu0.b32.cont [3/16] %v758, 128
        %775 = vxpose.xlu0.b32.cont [4/16] %v759, 128
        %776 = vxpose.xlu0.b32.cont [5/16] %v760, 128
        %777 = vxpose.xlu0.b32.cont [6/16] %v761, 128
        %778 = vxpose.xlu0.b32.cont [7/16] %v762, 128
        %779 = vxpose.xlu0.b32.cont [8/16] %v763, 128
        %780 = vxpose.xlu0.b32.cont [9/16] %v764, 128
        %781 = vxpose.xlu0.b32.cont [10/16] %v765, 128
        %782 = vxpose.xlu0.b32.cont [11/16] %v766, 128
        %783 = vxpose.xlu0.b32.cont [12/16] %v767, 128
        %784 = vxpose.xlu0.b32.cont [13/16] %v768, 128
        %785 = vxpose.xlu0.b32.cont [14/16] %v769, 128
        %786 = vxpose.xlu0.b32.cont [15/16] %v770, 128
        %787 = vxpose.xlu0.b32.end [16/16] %v771, 128
        %v788 = vpop.trf.xlu0
        %v789 = vpop.trf.xlu0
        %v790 = vpop.trf.xlu0
        %v791 = vpop.trf.xlu0
        %v792 = vpop.trf.xlu0
        %v793 = vpop.trf.xlu0
        %v794 = vpop.trf.xlu0
        %v795 = vpop.trf.xlu0
        %v796 = vpop.trf.xlu0
        %v797 = vpop.trf.xlu0
        %v798 = vpop.trf.xlu0
        %v799 = vpop.trf.xlu0
        %v800 = vpop.trf.xlu0
        %v801 = vpop.trf.xlu0
        %v802 = vpop.trf.xlu0
        %v803 = vpop.trf.xlu0
        %804 = vst [vmem:[%s332] sm:$0x7] %v788
        %s805 = sand.u32 %s139, 1
        %s806 = scalar_lea.sflag [#allocation4], %s805
        %s807 = sand.u32 %s139, 1
        %s808 = smul.addr %s807, 4
        %s809 = scalar_lea.vmem [#allocation10], %s808
        // Predicated region
        $region53: #{tpu_custom_call.1} parent=35 // pred_check
          %p810 = pneg %p149
        $region54: #{tpu_custom_call.1} parent=35 // pred_check_branch
          %812 = sbr.rel (%p810) target = $region56
        $region55: #{tpu_custom_call.1} parent=35 // pred_region
          %s814 = ssub.s32 64, 64
          %815 = vsyncadd %s806, %s814
          %s816 = smul.addr %s27, 64
          %s817 = scalar_lea.hbm %s4, %s816
          %s819 = sshll.u32 %s809, 4
          %s820 = int_to_ptr.vmem [resolvable:$true] %s819
          %822 = dma.vmem_to_hbm [thread:$0]  %s820, 64, %s817, %s806
        $region56: #{tpu_custom_call.1} parent=35 // pred_fallthru
          _
      $region36: #{tpu_custom_call.1} parent=5 // pred_fallthru
        _
      %p823 = scmp.le.s32.totalorder 2, %s22
      // Predicated region
      $region57: #{tpu_custom_call.1} parent=5 // pred_check
        %p824 = pneg %p823
      $region58: #{tpu_custom_call.1} parent=5 // pred_check_branch
        %826 = sbr.rel (%p824) target = $region60
      $region59: #{tpu_custom_call.1} parent=5 // pred_region
        %s827 = ssub.s32 %s22, 2
        // Predicated region
        $region61: #{tpu_custom_call.1} parent=59 // pred_check
          %p828 = pneg %p155
        $region62: #{tpu_custom_call.1} parent=59 // pred_check_branch
          %830 = sbr.rel (%p828) target = $region64
        $region63: #{tpu_custom_call.1} parent=59 // pred_region
          %s831 = sand.u32 %s140, 1
          %s832 = scalar_lea.sflag [#allocation4], %s831
          %s833 = sand.u32 %s140, 1
          %s834 = smul.addr %s833, 4
          %s835 = scalar_lea.vmem [#allocation10], %s834
          %836 = dma.done %s832, 64
        $region64: #{tpu_custom_call.1} parent=59 // pred_fallthru
          _
      $region60: #{tpu_custom_call.1} parent=5 // pred_fallthru
        _
    $region6: #{tpu_custom_call.1} parent=1 // loop_footer
      %s26 = sadd.s32 1, %s22
    $region7: #{tpu_custom_call.1} parent=1 // loop_footer_branch
      %21 = sbr.rel target = $region3
    $region8: #{tpu_custom_call.1} parent=1 // loop_exit
      _
    %837 = vsyncpa [#allocation3], 1
    %s838 = scalar_lea.sflag [#allocation3], 1
    %839 = vsyncpa %s838, 1
    %840 = vsyncpa [#allocation6], 1
    %s841 = scalar_lea.sflag [#allocation6], 1
    %842 = vsyncpa %s841, 1
    %843 = vsyncpa [#allocation9], 1
    %s844 = scalar_lea.sflag [#allocation9], 1
    %845 = vsyncpa %s844, 1
    %846 = vsyncpa [#allocation4], 1
    %s847 = scalar_lea.sflag [#allocation4], 1
    %848 = vsyncpa %s847, 1

</llo_original>
